<compile_context>
chip_gen: v6e
topology: v6e:2x2x1
jax: 0.10.0
libtpu: 0.0.40
codegen_flags: <defaults>
</compile_context>

<pallas_src>
import functools

import jax
import jax.numpy as jnp
from jax.experimental import pallas as pl
from jax.experimental.pallas import tpu as pltpu


def _fused_conv_bn_relu_pool_kernel(w_ref, x_ref, b_ref, g_ref, bt_ref, o_ref, *, eps):
    """Fused conv + bias + BatchNorm(batch stats) + ReLU + 2x2 maxpool.

    w_ref:  (Cout, T*Cin)   bf16   folded conv weight
    x_ref:  (T*Cin, P)      bf16   im2col, pixel order (hp, wp, n, h2, w2)
    b_ref:  (Cout, 1)       f32    conv bias
    g_ref:  (Cout, 1)       f32    BN gamma
    bt_ref: (Cout, 1)       f32    BN beta
    o_ref:  (Cout, Q=P//4)  f32    pooled output, pixel order (n, h2, w2)
    """
    # Single MXU matmul over the folded K = KH*KW*Cin contraction, f32 accumulation.
    acc = jnp.dot(w_ref[...], x_ref[...], preferred_element_type=jnp.float32)  # (Cout, P)
    acc = acc + b_ref[...]

    # BatchNorm2d (training mode): per-channel batch mean / biased variance over all
    # conv-output pixels, computed in a single pass (sum + sum of squares).
    p = acc.shape[1]
    inv_p = 1.0 / p
    s = jnp.sum(acc, axis=1, keepdims=True)                 # (Cout, 1)
    ss = jnp.sum(acc * acc, axis=1, keepdims=True)          # (Cout, 1)
    mu = s * inv_p
    var = ss * inv_p - mu * mu
    scale = g_ref[...] * jax.lax.rsqrt(var + eps)           # EUP rsqrt
    shift = bt_ref[...] - mu * scale

    # affine BN + ReLU (one mul + one add + one max per element, lane-dense).
    y = jnp.maximum(acc * scale + shift, 0.0)               # (Cout, P)

    # Fused MaxPool2d(2): the four pool-window positions (hp, wp) are four contiguous,
    # lane-aligned blocks of Q columns each.
    q = o_ref.shape[1]
    m0 = jnp.maximum(y[:, 0 * q:1 * q], y[:, 1 * q:2 * q])
    m1 = jnp.maximum(y[:, 2 * q:3 * q], y[:, 3 * q:4 * q])
    o_ref[...] = jnp.maximum(m0, m1)


def net_layer_forward(x_nchw, conv_w, conv_b, bn_gamma, bn_beta, *, eps=1e-5):
    """Forward pass of Net_layer. x_nchw: (N, Cin, H, W); returns (N, Cout, Hc//2, Wc//2)."""
    n, c_in, h, w = x_nchw.shape
    c_out, c_in2, kh, kw = conv_w.shape
    assert c_in == c_in2
    pad = 1
    hc = h + 2 * pad - kh + 1
    wc = w + 2 * pad - kw + 1
    # Fused single-pass kernel assumes even conv-output dims (true for k=3, pad=1, even H/W).
    assert hc % 2 == 0 and wc % 2 == 0
    h2, w2 = hc // 2, wc // 2
    t = kh * kw
    q = n * h2 * w2          # pooled pixels per channel (output lane width)
    p = 4 * q                # conv pixels per channel

    # ---- glue: build the im2col directly in matmul layout (T*Cin, P) with pixel order
    # (hp, wp, n, h2, w2), and the folded weight (Cout, T*Cin); both bf16 MXU operands. ----
    xf = x_nchw.astype(jnp.float32)
    xp = jnp.pad(xf, ((0, 0), (0, 0), (pad, pad), (pad, pad)))
    taps = jnp.stack(
        [xp[:, :, i:i + hc, j:j + wc] for i in range(kh) for j in range(kw)], axis=0
    )                                                        # (T, N, Cin, Hc, Wc)
    taps = taps.reshape(t, n, c_in, h2, 2, w2, 2)            # split (h2, hp), (w2, wp)
    taps = jnp.transpose(taps, (0, 2, 4, 6, 1, 3, 5))        # (T, Cin, hp, wp, N, H2, W2)
    xs_t = taps.reshape(t * c_in, p).astype(jnp.bfloat16)    # (T*Cin, P)

    w_t = jnp.transpose(conv_w, (0, 2, 3, 1)).reshape(c_out, t * c_in).astype(jnp.bfloat16)
    b2 = conv_b.reshape(c_out, 1).astype(jnp.float32)
    g2 = bn_gamma.reshape(c_out, 1).astype(jnp.float32)
    bt2 = bn_beta.reshape(c_out, 1).astype(jnp.float32)

    vmem = pl.BlockSpec(memory_space=pltpu.MemorySpace.VMEM)
    pooled = pl.pallas_call(
        functools.partial(_fused_conv_bn_relu_pool_kernel, eps=eps),
        out_shape=jax.ShapeDtypeStruct((c_out, q), jnp.float32),
        in_specs=[vmem, vmem, vmem, vmem, vmem],
        out_specs=vmem,
        compiler_params=pltpu.CompilerParams(vmem_limit_bytes=32 * 1024 * 1024),
    )(w_t, xs_t, b2, g2, bt2)

    # pooled columns are ordered (n, h2, w2); restore NCHW.
    return jnp.transpose(pooled.reshape(c_out, n, h2, w2), (1, 0, 2, 3))


def _reference_forward(x, w, b, gamma, beta, eps=1e-5):
    """Pure-JAX f32 reference with identical semantics (sanity check)."""
    y = jax.lax.conv_general_dilated(
        x, w, window_strides=(1, 1), padding=((1, 1), (1, 1)),
        dimension_numbers=("NCHW", "OIHW", "NCHW"))
    y = y + b[None, :, None, None]
    mu = jnp.mean(y, axis=(0, 2, 3), keepdims=True)
    var = jnp.mean((y - mu) ** 2, axis=(0, 2, 3), keepdims=True)
    y = (y - mu) * jax.lax.rsqrt(var + eps)
    y = y * gamma[None, :, None, None] + beta[None, :, None, None]
    y = jnp.maximum(y, 0.0)
    nn_, c, hh, ww = y.shape
    y = y[:, :, :hh // 2 * 2, :ww // 2 * 2].reshape(nn_, c, hh // 2, 2, ww // 2, 2)
    return jnp.max(y, axis=(3, 5))


if __name__ == "__main__":
    key = jax.random.PRNGKey(0)
    N, Cin, H, W = 2, 4, 16, 16     # input_size = 4
    Cout, K = 8, 3                  # output_size = 8, kernel_size = 3

    kx, kw_, kb = jax.random.split(key, 3)
    x = jax.random.normal(kx, (N, Cin, H, W), jnp.float32)
    fan_in = Cin * K * K
    conv_w = jax.random.normal(kw_, (Cout, Cin, K, K), jnp.float32) / jnp.sqrt(fan_in)
    conv_b = 0.1 * jax.random.normal(kb, (Cout,), jnp.float32)
    bn_gamma = jnp.ones((Cout,), jnp.float32)   # PyTorch BatchNorm2d default init
    bn_beta = jnp.zeros((Cout,), jnp.float32)

    out = jax.jit(net_layer_forward)(x, conv_w, conv_b, bn_gamma, bn_beta)
    out = jax.block_until_ready(out)

    ref = _reference_forward(x, conv_w, conv_b, bn_gamma, bn_beta)
    assert out.shape == (N, Cout, H // 2, W // 2), out.shape
    # bf16 MXU operands (f32 accumulation) -> loosened tolerance vs f32 reference.
    assert jnp.allclose(out, ref, atol=2e-2, rtol=2e-2), float(jnp.max(jnp.abs(out - ref)))

    print("KERNEL_OK")
</pallas_src>

<mosaic_0001>
module attributes {stable_mosaic.version = 11 : i64} {
  func.func @_fused_conv_bn_relu_pool_kernel(%arg0: memref<8x36xbf16, #tpu.memory_space<vmem>>, %arg1: memref<36x512xbf16, #tpu.memory_space<vmem>>, %arg2: memref<8x1xf32, #tpu.memory_space<vmem>>, %arg3: memref<8x1xf32, #tpu.memory_space<vmem>>, %arg4: memref<8x1xf32, #tpu.memory_space<vmem>>, %arg5: memref<8x128xf32, #tpu.memory_space<vmem>>) attributes {dimension_semantics = [], scalar_prefetch = 0 : i64, scratch_operands = 0 : i64, tpu.core_type = #tpu.core_type<tc>} {
    %c0 = arith.constant 0 : index
    %c0_0 = arith.constant 0 : index
    %0 = vector.load %arg0[%c0, %c0_0] : memref<8x36xbf16, #tpu.memory_space<vmem>>, vector<8x36xbf16>
    %c0_1 = arith.constant 0 : index
    %c0_2 = arith.constant 0 : index
    %1 = vector.load %arg1[%c0_1, %c0_2] : memref<36x512xbf16, #tpu.memory_space<vmem>>, vector<36x512xbf16>
    %cst = arith.constant dense<0.000000e+00> : vector<8x512xf32>
    %2 = tpu.matmul %0, %1, %cst {dimension_numbers = #tpu.dot_dimension_numbers<[1], [0], [0], [1], [0, 0, 1, 1], [], []>} : vector<8x36xbf16>, vector<36x512xbf16>, vector<8x512xf32> -> vector<8x512xf32>
    %c0_3 = arith.constant 0 : index
    %c0_4 = arith.constant 0 : index
    %3 = vector.load %arg2[%c0_3, %c0_4] : memref<8x1xf32, #tpu.memory_space<vmem>>, vector<8x1xf32>
    %4 = vector.broadcast %3 : vector<8x1xf32> to vector<8x512xf32>
    %5 = arith.addf %2, %4 : vector<8x512xf32>
    %cst_5 = arith.constant dense<0.000000e+00> : vector<8xf32>
    %6 = vector.multi_reduction <add>, %5, %cst_5 [1] : vector<8x512xf32> to vector<8xf32>
    %7 = vector.shape_cast %6 : vector<8xf32> to vector<8x1xf32>
    %8 = arith.mulf %5, %5 : vector<8x512xf32>
    %cst_6 = arith.constant dense<0.000000e+00> : vector<8xf32>
    %9 = vector.multi_reduction <add>, %8, %cst_6 [1] : vector<8x512xf32> to vector<8xf32>
    %10 = vector.shape_cast %9 : vector<8xf32> to vector<8x1xf32>
    %cst_7 = arith.constant 0.001953125 : f32
    %11 = vector.broadcast %cst_7 : f32 to vector<8x1xf32>
    %12 = arith.mulf %7, %11 : vector<8x1xf32>
    %cst_8 = arith.constant 0.001953125 : f32
    %13 = vector.broadcast %cst_8 : f32 to vector<8x1xf32>
    %14 = arith.mulf %10, %13 : vector<8x1xf32>
    %15 = arith.mulf %12, %12 : vector<8x1xf32>
    %16 = arith.subf %14, %15 : vector<8x1xf32>
    %c0_9 = arith.constant 0 : index
    %c0_10 = arith.constant 0 : index
    %17 = vector.load %arg3[%c0_9, %c0_10] : memref<8x1xf32, #tpu.memory_space<vmem>>, vector<8x1xf32>
    %cst_11 = arith.constant 9.99999974E-6 : f32
    %18 = vector.broadcast %cst_11 : f32 to vector<8x1xf32>
    %19 = arith.addf %16, %18 : vector<8x1xf32>
    %20 = math.rsqrt %19 : vector<8x1xf32>
    %21 = arith.mulf %17, %20 : vector<8x1xf32>
    %c0_12 = arith.constant 0 : index
    %c0_13 = arith.constant 0 : index
    %22 = vector.load %arg4[%c0_12, %c0_13] : memref<8x1xf32, #tpu.memory_space<vmem>>, vector<8x1xf32>
    %23 = arith.mulf %12, %21 : vector<8x1xf32>
    %24 = arith.subf %22, %23 : vector<8x1xf32>
    %25 = vector.broadcast %21 : vector<8x1xf32> to vector<8x512xf32>
    %26 = arith.mulf %5, %25 : vector<8x512xf32>
    %27 = vector.broadcast %24 : vector<8x1xf32> to vector<8x512xf32>
    %28 = arith.addf %26, %27 : vector<8x512xf32>
    %cst_14 = arith.constant 0.000000e+00 : f32
    %29 = vector.broadcast %cst_14 : f32 to vector<8x512xf32>
    %30 = arith.maximumf %28, %29 : vector<8x512xf32>
    %31 = vector.extract_strided_slice %30 {offsets = [0, 0], sizes = [8, 128], strides = [1, 1]} : vector<8x512xf32> to vector<8x128xf32>
    %32 = vector.extract_strided_slice %30 {offsets = [0, 128], sizes = [8, 128], strides = [1, 1]} : vector<8x512xf32> to vector<8x128xf32>
    %33 = arith.maximumf %31, %32 : vector<8x128xf32>
    %34 = vector.extract_strided_slice %30 {offsets = [0, 256], sizes = [8, 128], strides = [1, 1]} : vector<8x512xf32> to vector<8x128xf32>
    %35 = vector.extract_strided_slice %30 {offsets = [0, 384], sizes = [8, 128], strides = [1, 1]} : vector<8x512xf32> to vector<8x128xf32>
    %36 = arith.maximumf %34, %35 : vector<8x128xf32>
    %37 = arith.maximumf %33, %36 : vector<8x128xf32>
    %c0_15 = arith.constant 0 : index
    %c0_16 = arith.constant 0 : index
    %38 = vector.load %arg5[%c0_15, %c0_16] : memref<8x128xf32, #tpu.memory_space<vmem>>, vector<8x128xf32>
    tpu.vector_store %arg5[%c0_15, %c0_16], %37 {strides = array<i32>} : memref<8x128xf32, #tpu.memory_space<vmem>>, vector<8x128xf32>,
    return
  }
}

</mosaic_0001>

<llo_original>
// kernel: net_layer_forward.1
$region0: #{net_layer_forward.1}
  #allocation0 [shape = 'u32[]', space=smem, size = 0x4, offset = 0x4, fixed_abs, tag = 'smem constant byte address 0x4 - core index']
  #allocation1 [shape = 'u32[144,128]{1,0:T(1,128)}', space=vmem, size = 0x12000, scoped, tag = 'internal scratch']
  %s0 = inlined_call_operand.vmem [shape: bf16[8,36], index: 0, kind: input, shape index: {}]
  %s1 = inlined_call_operand.vmem [shape: bf16[36,512], index: 1, kind: input, shape index: {}]
  %s2 = inlined_call_operand.vmem [shape: f32[8,1], index: 2, kind: input, shape index: {}]
  %s3 = inlined_call_operand.vmem [shape: f32[8,1], index: 3, kind: input, shape index: {}]
  %s4 = inlined_call_operand.vmem [shape: f32[8,1], index: 4, kind: input, shape index: {}]
  %s5 = inlined_call_operand.vmem [shape: f32[8,128], index: 5, kind: output, shape index: {}]
  %s6 = sld [smem:[#allocation0]]
  $region30: #{net_layer_forward.1} parent=0
    _
  %s8 = ssub.s32 1, %s6
  %s9 = scalar_select 0, %s8, %s6
  // Predicated region
  $region2: #{net_layer_forward.1} parent=0 // pred_check
    _
  $region3: #{net_layer_forward.1} parent=0 // pred_check_branch
    %11 = sbr.rel (0) target = $region5
  $region4: #{net_layer_forward.1} parent=0 // pred_region
    _
  $region5: #{net_layer_forward.1} parent=0 // pred_fallthru
    _
  // Predicated region
  $region6: #{net_layer_forward.1} parent=0 // pred_check
    _
  $region7: #{net_layer_forward.1} parent=0 // pred_check_branch
    %13 = sbr.rel (0) target = $region9
  $region8: #{net_layer_forward.1} parent=0 // pred_region
    _
  $region9: #{net_layer_forward.1} parent=0 // pred_fallthru
    _
  // Predicated region
  $region10: #{net_layer_forward.1} parent=0 // pred_check
    _
  $region11: #{net_layer_forward.1} parent=0 // pred_check_branch
    %15 = sbr.rel (0) target = $region13
  $region12: #{net_layer_forward.1} parent=0 // pred_region
    _
  $region13: #{net_layer_forward.1} parent=0 // pred_fallthru
    _
  // Predicated region
  $region14: #{net_layer_forward.1} parent=0 // pred_check
    _
  $region15: #{net_layer_forward.1} parent=0 // pred_check_branch
    %17 = sbr.rel (0) target = $region17
  $region16: #{net_layer_forward.1} parent=0 // pred_region
    _
  $region17: #{net_layer_forward.1} parent=0 // pred_fallthru
    _
  // Predicated region
  $region18: #{net_layer_forward.1} parent=0 // pred_check
    _
  $region19: #{net_layer_forward.1} parent=0 // pred_check_branch
    %19 = sbr.rel (0) target = $region21
  $region20: #{net_layer_forward.1} parent=0 // pred_region
    _
  $region21: #{net_layer_forward.1} parent=0 // pred_fallthru
    _
  %v21 = vld [vmem:[%s0] sm:$0xf]
  %v22 = vld [vmem:[%s1] sm:$0xff]
  %v23 = vld [vmem:[%s1 + $0x8] sm:$0xff]
  %v24 = vld [vmem:[%s1 + $0x10] sm:$0xff]
  %v25 = vld [vmem:[%s1 + $0x18] sm:$0xff]
  %v26 = vld [vmem:[%s1 + $0x20] sm:$0xff]
  %v27 = vld [vmem:[%s1 + $0x28] sm:$0xff]
  %v28 = vld [vmem:[%s1 + $0x30] sm:$0xff]
  %v29 = vld [vmem:[%s1 + $0x38] sm:$0xff]
  %v30 = vld [vmem:[%s1 + $0x40] sm:$0x33]
  %v31 = vld [vmem:[%s1 + $0x48] sm:$0x33]
  %v32 = vld [vmem:[%s2] sm:$0xff]
  %34 = vset.pattern.permute.xlu0 0
  %35 = vperm.xlu0 %34, %v32
  %v36 = vpop.permute.xlu0 %35
  %v48 = vunpack.c.l.b16 %v22
  %v49 = vunpack.c.h.b16 %v22
  %v50 = vunpack.c.l.b16 %v23
  %v51 = vunpack.c.h.b16 %v23
  %v52 = vunpack.c.l.b16 %v24
  %v53 = vunpack.c.h.b16 %v24
  %v54 = vunpack.c.l.b16 %v25
  %v55 = vunpack.c.h.b16 %v25
  %v56 = vunpack.c.l.b16 %v26
  %v57 = vunpack.c.h.b16 %v26
  %v58 = vunpack.c.l.b16 %v27
  %v59 = vunpack.c.h.b16 %v27
  %v60 = vunpack.c.l.b16 %v28
  %v61 = vunpack.c.h.b16 %v28
  %v62 = vunpack.c.l.b16 %v29
  %v63 = vunpack.c.h.b16 %v29
  %v64 = vunpack.c.l.b16 %v30
  %v65 = vunpack.c.h.b16 %v30
  %v66 = vunpack.c.l.b16 %v31
  %v67 = vunpack.c.h.b16 %v31
  %v68 = vpack.c.b16 %v52, %v48
  %v69 = vpack.c.b16 %v53, %v49
  %v70 = vpack.c.b16 %v54, %v50
  %v71 = vpack.c.b16 %v55, %v51
  %v72 = vpack.c.b16 %v60, %v56
  %v73 = vpack.c.b16 %v61, %v57
  %v74 = vpack.c.b16 %v62, %v58
  %v75 = vpack.c.b16 %v63, %v59
  %v76 = vpack.c.b16 %v64, %v64
  %v77 = vpack.c.b16 %v65, %v65
  %v78 = vpack.c.b16 %v66, %v66
  %v79 = vpack.c.b16 %v67, %v67
  %vm88 = vcmask 293888
  %v90 = vsel %vm88, %v21, 0
  %vm92 = vcmask 1041408
  %v94 = vsel %vm92, %v76, 0
  %v97 = vsel %vm92, %v77, 0
  %v100 = vsel %vm92, %v78, 0
  %v103 = vsel %vm92, %v79, 0
  %105 = vmatprep.subr.bf16.mxu0 0
  %106 = vmatpush1.bf16.msra.mxu0 0
  %107 = vmatprep.subr.bf16.mxu0 0
  %108 = vmatpush1.bf16.msra.mxu0 0
  %109 = vmatprep.subr.bf16.mxu0 0
  %110 = vmatpush1.bf16.msra.mxu0 0
  %111 = vmatprep.subr.bf16.mxu0 0
  %112 = vmatpush1.bf16.msra.mxu0 0
  %113 = vmatprep.subr.bf16.mxu0 0
  %114 = vmatpush1.bf16.msra.mxu0 0
  %115 = vmatprep.subr.bf16.mxu0 %v97
  %116 = vmatpush1.bf16.msra.mxu0 %v94
  %117 = vmatprep.subr.bf16.mxu0 %v73
  %118 = vmatpush1.bf16.msra.mxu0 %v72
  %119 = vmatprep.subr.bf16.mxu0 %v69
  %120 = vmatpush1.bf16.msra.mxu0 %v68
  %121 = vmatprep.subr.bf16.mxu0 0
  %122 = vmatpush2.bf16.msra.mxu0 0
  %123 = vmatprep.subr.bf16.mxu0 0
  %124 = vmatpush2.bf16.msra.mxu0 0
  %125 = vmatprep.subr.bf16.mxu0 0
  %126 = vmatpush2.bf16.msra.mxu0 0
  %127 = vmatprep.subr.bf16.mxu0 0
  %128 = vmatpush2.bf16.msra.mxu0 0
  %129 = vmatprep.subr.bf16.mxu0 0
  %130 = vmatpush2.bf16.msra.mxu0 0
  %131 = vmatprep.subr.bf16.mxu0 0
  %132 = vmatpush2.bf16.msra.mxu0 0
  %133 = vmatprep.subr.bf16.mxu0 0
  %134 = vmatpush2.bf16.msra.mxu0 0
  %135 = vmatprep.subr.bf16.mxu0 0
  %136 = vmatpush2.bf16.msra.mxu0 0
  %137 = vmatprep.mubr.bf16.mxu0 0
  %138 = vmatmul.mubr.bf16.gmra.mxu0 %v90
  %v139 = vpop.f32.mrf.mxu0
  %v140 = vadd.f32 %v36, %v139
  %v141 = vpop.f32.mrf.mxu0
  %v142 = vadd.f32 %v36, %v141
  %v143 = vpop.f32.mrf.mxu0
  %v144 = vpop.f32.mrf.mxu0
  %145 = vdwg.mxu0
  %146 = vmatprep.subr.bf16.mxu0 0
  %147 = vmatpush1.bf16.msra.mxu0 0
  %148 = vmatprep.subr.bf16.mxu0 0
  %149 = vmatpush1.bf16.msra.mxu0 0
  %150 = vmatprep.subr.bf16.mxu0 0
  %151 = vmatpush1.bf16.msra.mxu0 0
  %152 = vmatprep.subr.bf16.mxu0 0
  %153 = vmatpush1.bf16.msra.mxu0 0
  %154 = vmatprep.subr.bf16.mxu0 0
  %155 = vmatpush1.bf16.msra.mxu0 0
  %156 = vmatprep.subr.bf16.mxu0 %v103
  %157 = vmatpush1.bf16.msra.mxu0 %v100
  %158 = vmatprep.subr.bf16.mxu0 %v75
  %159 = vmatpush1.bf16.msra.mxu0 %v74
  %160 = vmatprep.subr.bf16.mxu0 %v71
  %161 = vmatpush1.bf16.msra.mxu0 %v70
  %162 = vmatprep.subr.bf16.mxu0 0
  %163 = vmatpush2.bf16.msra.mxu0 0
  %164 = vmatprep.subr.bf16.mxu0 0
  %165 = vmatpush2.bf16.msra.mxu0 0
  %166 = vmatprep.subr.bf16.mxu0 0
  %167 = vmatpush2.bf16.msra.mxu0 0
  %168 = vmatprep.subr.bf16.mxu0 0
  %169 = vmatpush2.bf16.msra.mxu0 0
  %170 = vmatprep.subr.bf16.mxu0 0
  %171 = vmatpush2.bf16.msra.mxu0 0
  %172 = vmatprep.subr.bf16.mxu0 0
  %173 = vmatpush2.bf16.msra.mxu0 0
  %174 = vmatprep.subr.bf16.mxu0 0
  %175 = vmatpush2.bf16.msra.mxu0 0
  %176 = vmatprep.subr.bf16.mxu0 0
  %177 = vmatpush2.bf16.msra.mxu0 0
  %178 = vmatprep.mubr.bf16.mxu0 0
  %179 = vmatmul.mubr.bf16.gmra.mxu0 %v90
  %v180 = vpop.f32.mrf.mxu0
  %v181 = vadd.f32 %v36, %v180
  %v182 = vpop.f32.mrf.mxu0
  %v183 = vadd.f32 %v36, %v182
  %v184 = vpop.f32.mrf.mxu0
  %v185 = vpop.f32.mrf.mxu0
  %186 = vdwg.mxu0
  %v187 = vadd.f32 %v140, %v142
  %v188 = vadd.f32 %v187, %v181
  %v189 = vadd.f32 %v188, %v183
  %190 = vadd.xlane.f32.xlu0 %v189
  %v191 = vpop.xlane.xlu0 %190
  %v192 = vmul.f32 %v140, %v140
  %v193 = vmul.f32 %v142, %v142
  %v194 = vmul.f32 %v181, %v181
  %v195 = vmul.f32 %v183, %v183
  %v196 = vadd.f32 %v192, %v193
  %v197 = vadd.f32 %v196, %v194
  %v198 = vadd.f32 %v197, %v195
  %199 = vadd.xlane.f32.xlu0 %v198
  %v200 = vpop.xlane.xlu0 %199
  %v201 = vmul.f32 %v191, 0.001953125
  %v202 = vmul.f32 %v200, 0.001953125
  %v203 = vmul.f32 %v201, %v201
  %v204 = vsub.f32 %v202, %v203
  %v205 = vld [vmem:[%s3] sm:$0xff]
  %v206 = vadd.f32 %v204, 1e-05
  %v207 = vrsqrt.pop %v206
  %v208 = vmul.f32 %v205, %v207
  %v209 = vld [vmem:[%s4] sm:$0xff]
  %v210 = vmul.f32 %v201, %v208
  %v211 = vsub.f32 %v209, %v210
  %213 = vset.pattern.permute.xlu0 0
  %214 = vperm.xlu0 %213, %v208
  %v215 = vpop.permute.xlu0 %214
  %v217 = vmul.f32 %v140, %v215
  %v218 = vmul.f32 %v142, %v215
  %v219 = vmul.f32 %v181, %v215
  %v220 = vmul.f32 %v183, %v215
  %222 = vset.pattern.permute.xlu0 0
  %223 = vperm.xlu0 %222, %v211
  %v224 = vpop.permute.xlu0 %223
  %v226 = vadd.f32 %v217, %v224
  %v227 = vadd.f32 %v218, %v224
  %v228 = vadd.f32 %v219, %v224
  %v229 = vadd.f32 %v220, %v224
  %v230 = vmax.f32 %v226, 0.0
  %v231 = vmax.f32 %v227, 0.0
  %v232 = vmax.f32 %v228, 0.0
  %v233 = vmax.f32 %v229, 0.0
  %v234 = vmax.f32 %v230, %v231
  %v235 = vmax.f32 %v232, %v233
  %v236 = vmax.f32 %v234, %v235
  %237 = vst [vmem:[%s5] sm:$0xff] %v236
  // Predicated region
  $region22: #{net_layer_forward.1} parent=0 // pred_check
    _
  $region23: #{net_layer_forward.1} parent=0 // pred_check_branch
    %239 = sbr.rel (0) target = $region25
  $region24: #{net_layer_forward.1} parent=0 // pred_region
    _
  $region25: #{net_layer_forward.1} parent=0 // pred_fallthru
    _
  // Predicated region
  $region26: #{net_layer_forward.1} parent=0 // pred_check
    _
  $region27: #{net_layer_forward.1} parent=0 // pred_check_branch
    %241 = sbr.rel (0) target = $region29
  $region28: #{net_layer_forward.1} parent=0 // pred_region
    _
  $region29: #{net_layer_forward.1} parent=0 // pred_fallthru
    _

</llo_original>
